<compile_context>
chip_gen: v5e
topology: v5e:2x2
jax: 0.10.0
libtpu: 0.0.40
codegen_flags: <defaults>
</compile_context>

<pallas_src>
import functools

import numpy as np

import jax
import jax.numpy as jnp
from jax.experimental import pallas as pl
from jax.experimental.pallas import tpu as pltpu

_LANE = 128
_SUBLANE = 8
_NEG = -1e30  # large negative for masking padded class lanes

_VMEM_SPEC = pl.BlockSpec(memory_space=pltpu.MemorySpace.VMEM)


def _round_up(x, m):
    return ((x + m - 1) // m) * m


def _tpu_config():
    """Generation-aware tile size / scoped-VMEM limit / fused-path cutoff."""
    vmem_cap = 128 * 1024 * 1024
    try:
        info = pltpu.get_tpu_info()
        cap = getattr(info, "vmem_capacity_bytes", None)
        if cap:
            vmem_cap = int(cap)
    except Exception:
        pass
    if vmem_cap <= 64 * 1024 * 1024:
        # v7x-class: 64 MiB/core. 2048x2048 bf16 A tiles (2 x 8 MiB double-buffered)
        # + residents stay well under a 48 MiB scoped limit. Do NOT go to 4096.
        return {"tile": 2048, "vmem_limit": 48 * 1024 * 1024, "fused_max": 3072}
    # v5e / v6e: 128 MiB physical. 4096 tiles amortize per-grid-step overhead to
    # a few percent; raise the scoped limit towards physical.
    return {"tile": 4096, "vmem_limit": 100 * 1024 * 1024, "fused_max": 4096}


def _masked_log_softmax(logits, num_classes):
    """log_softmax over the lane axis, ignoring padded class columns."""
    col = jax.lax.broadcasted_iota(jnp.int32, logits.shape, 1)
    valid = col < num_classes
    masked = jnp.where(valid, logits, _NEG)
    m = jnp.max(masked, axis=1, keepdims=True)
    shifted = masked - m
    expv = jnp.where(valid, jnp.exp(shifted), 0.0)
    lse = jnp.log(jnp.sum(expv, axis=1, keepdims=True))
    return shifted - lse


# ----------------------------- Pallas kernels ------------------------------


def gcn_fused_kernel(a_ref, x_ref, w1_ref, b1_ref, w2_ref, b2_ref, p_ref,
                     o_ref, *, num_classes):
    """Whole forward in one launch (padded graphs that fit in VMEM)."""
    a = a_ref[...]                                                  # bf16
    xw = jnp.dot(x_ref[...], w1_ref[...], preferred_element_type=jnp.float32)
    h1 = jnp.dot(a, xw.astype(jnp.bfloat16), preferred_element_type=jnp.float32)
    h1 = jnp.maximum(h1 + b1_ref[...], 0.0).astype(jnp.bfloat16)
    # TODO(synk): Dropout(0.3) is identity in eval mode; training-mode masking
    # via pltpu.prng_* is intentionally omitted.
    hw = jnp.dot(h1, w2_ref[...], preferred_element_type=jnp.float32)
    h2 = jnp.dot(a, hw.astype(jnp.bfloat16), preferred_element_type=jnp.float32)
    h2 = h2 + b2_ref[...]
    pooled = jnp.dot(p_ref[...], h2, preferred_element_type=jnp.float32)
    o_ref[...] = _masked_log_softmax(pooled, num_classes).astype(o_ref.dtype)


def xw_kernel(x_ref, w_ref, o_ref):
    """Hoisted X @ W1 (row-tiled), emitted once in bf16."""
    o_ref[...] = jnp.dot(x_ref[...], w_ref[...],
                         preferred_element_type=jnp.float32).astype(o_ref.dtype)


def gcn_layer1_kernel(cnt_ref, cols_ref, a_ref, xw_ref, w2_ref, b1_ref,
                      hw_ref, acc_ref, *, tk):
    """Block-sparse GCNConv #1 fused with the H1 @ W2 projection.

    acc += A[i, cols[i,k]] @ XW[cols[i,k]]  (skipped when k >= cnt[i])
    at last k: HW[i] = relu(acc + b1) @ W2   (bf16)
    """
    i = pl.program_id(0)
    k = pl.program_id(1)

    @pl.when(k == 0)
    def _():
        acc_ref[...] = jnp.zeros_like(acc_ref)

    @pl.when(k < cnt_ref[i])
    def _():
        off = pl.multiple_of(cols_ref[i, k] * tk, tk)
        xw = xw_ref[pl.ds(off, tk), :]                       # VMEM-resident slice
        acc_ref[...] += jnp.dot(a_ref[...], xw,
                                preferred_element_type=jnp.float32)

    @pl.when(k == pl.num_programs(1) - 1)
    def _():
        h1 = jnp.maximum(acc_ref[...] + b1_ref[...], 0.0).astype(jnp.bfloat16)
        # TODO(synk): Dropout(0.3) is identity in eval mode; omitted.
        hw_ref[...] = jnp.dot(h1, w2_ref[...],
                              preferred_element_type=jnp.float32
                              ).astype(hw_ref.dtype)


def gcn_layer2_pool_kernel(cnt_ref, cols_ref, a_ref, hw_ref, b2_ref, p_ref,
                           part_ref, acc_ref, *, tk):
    """Block-sparse GCNConv #2 + per-row-tile partial mean pool.

    acc += A[i, cols[i,k]] @ HW[cols[i,k]]  (skipped when k >= cnt[i])
    at last k: part[i] = P[:, i-tile] @ (acc + b2)
    Writing per-row-tile partials (instead of a shared pooled accumulator)
    keeps the i axis race-free so it can be marked "parallel" for megacore.
    """
    i = pl.program_id(0)
    k = pl.program_id(1)

    @pl.when(k == 0)
    def _():
        acc_ref[...] = jnp.zeros_like(acc_ref)

    @pl.when(k < cnt_ref[i])
    def _():
        off = pl.multiple_of(cols_ref[i, k] * tk, tk)
        hw = hw_ref[pl.ds(off, tk), :]                       # VMEM-resident slice
        acc_ref[...] += jnp.dot(a_ref[...], hw,
                                preferred_element_type=jnp.float32)

    @pl.when(k == pl.num_programs(1) - 1)
    def _():
        h2 = acc_ref[...] + b2_ref[...]                      # (tm, C_pad) f32
        part_ref[0] = jnp.dot(p_ref[...], h2,
                              preferred_element_type=jnp.float32)


def pool_finalize_kernel(part_ref, o_ref, *, num_classes):
    """Sum per-row-tile pooled partials + masked log_softmax."""
    pooled = jnp.sum(part_ref[...], axis=0)                  # (G_pad, C_pad)
    o_ref[...] = _masked_log_softmax(pooled, num_classes).astype(o_ref.dtype)


# ------------------------------ Wrappers ------------------------------------


def gcn_fused_small(a, x, w1, b1, w2, b2, p, *, num_classes, vmem_limit):
    g_pad = p.shape[0]
    c_pad = w2.shape[1]
    return pl.pallas_call(
        functools.partial(gcn_fused_kernel, num_classes=num_classes),
        out_shape=jax.ShapeDtypeStruct((g_pad, c_pad), jnp.float32),
        in_specs=[_VMEM_SPEC] * 7,
        out_specs=_VMEM_SPEC,
        compiler_params=pltpu.CompilerParams(vmem_limit_bytes=vmem_limit),
    )(a, x, w1, b1, w2, b2, p)


def compute_xw(x, w, *, tr, vmem_limit):
    n_pad, f_pad = x.shape
    h_pad = w.shape[1]
    return pl.pallas_call(
        xw_kernel,
        out_shape=jax.ShapeDtypeStruct((n_pad, h_pad), jnp.bfloat16),
        grid_spec=pltpu.PrefetchScalarGridSpec(
            num_scalar_prefetch=0,
            grid=(n_pad // tr,),
            in_specs=[pl.BlockSpec((tr, f_pad), lambda r: (r, 0)),
                      pl.BlockSpec((f_pad, h_pad), lambda r: (0, 0))],
            out_specs=pl.BlockSpec((tr, h_pad), lambda r: (r, 0)),
        ),
        compiler_params=pltpu.CompilerParams(
            dimension_semantics=("parallel",), vmem_limit_bytes=vmem_limit),
    )(x, w)


def gcn_layer1(cnt, cols, a, xw, w2, b1, *, tm, tk, max_cnt, vmem_limit):
    n_pad = a.shape[0]
    h_pad = xw.shape[1]
    c_pad = w2.shape[1]
    num_i = n_pad // tm
    return pl.pallas_call(
        functools.partial(gcn_layer1_kernel, tk=tk),
        out_shape=jax.ShapeDtypeStruct((n_pad, c_pad), jnp.bfloat16),
        grid_spec=pltpu.PrefetchScalarGridSpec(
            num_scalar_prefetch=2,
            grid=(num_i, max_cnt),
            in_specs=[
                # A tile: data-dependent column tile (skips empty blocks; clamped
                # repeats mean no redundant DMA for padded reduction steps).
                pl.BlockSpec((tm, tk), lambda i, k, cnt, cols: (i, cols[i, k])),
                # XW: fully VMEM-resident (N x 128 bf16), never re-DMA'd.
                pl.BlockSpec((n_pad, h_pad), lambda i, k, cnt, cols: (0, 0)),
                pl.BlockSpec((h_pad, c_pad), lambda i, k, cnt, cols: (0, 0)),  # W2
                pl.BlockSpec((1, h_pad), lambda i, k, cnt, cols: (0, 0)),      # b1
            ],
            out_specs=pl.BlockSpec((tm, c_pad), lambda i, k, cnt, cols: (i, 0)),
            scratch_shapes=[pltpu.VMEM((tm, h_pad), jnp.float32)],
        ),
        compiler_params=pltpu.CompilerParams(
            dimension_semantics=("parallel", "arbitrary"),
            vmem_limit_bytes=vmem_limit),
    )(cnt, cols, a, xw, w2, b1)


def gcn_layer2_pool(cnt, cols, a, hw, b2, p, *, tm, tk, max_cnt, vmem_limit):
    n_pad = a.shape[0]
    c_pad = hw.shape[1]
    g_pad = p.shape[0]
    num_i = n_pad // tm
    return pl.pallas_call(
        functools.partial(gcn_layer2_pool_kernel, tk=tk),
        out_shape=jax.ShapeDtypeStruct((num_i, g_pad, c_pad), jnp.float32),
        grid_spec=pltpu.PrefetchScalarGridSpec(
            num_scalar_prefetch=2,
            grid=(num_i, max_cnt),
            in_specs=[
                pl.BlockSpec((tm, tk), lambda i, k, cnt, cols: (i, cols[i, k])),
                pl.BlockSpec((n_pad, c_pad), lambda i, k, cnt, cols: (0, 0)),  # HW resident
                pl.BlockSpec((1, c_pad), lambda i, k, cnt, cols: (0, 0)),      # b2
                pl.BlockSpec((g_pad, tm), lambda i, k, cnt, cols: (0, i)),     # P cols
            ],
            out_specs=pl.BlockSpec((1, g_pad, c_pad),
                                   lambda i, k, cnt, cols: (i, 0, 0)),
            scratch_shapes=[pltpu.VMEM((tm, c_pad), jnp.float32)],
        ),
        compiler_params=pltpu.CompilerParams(
            dimension_semantics=("parallel", "arbitrary"),
            vmem_limit_bytes=vmem_limit),
    )(cnt, cols, a, hw, b2, p)


def pool_finalize(part, *, num_classes, vmem_limit):
    _, g_pad, c_pad = part.shape
    return pl.pallas_call(
        functools.partial(pool_finalize_kernel, num_classes=num_classes),
        out_shape=jax.ShapeDtypeStruct((g_pad, c_pad), jnp.float32),
        in_specs=[_VMEM_SPEC],
        out_specs=_VMEM_SPEC,
        compiler_params=pltpu.CompilerParams(vmem_limit_bytes=vmem_limit),
    )(part)


# --------------------------- Plain-JAX / host glue ---------------------------


def build_normalized_adjacency(edge_index, num_nodes, out_dtype=jnp.float32):
    """A_hat = D^-1/2 (A + I) D^-1/2, matching PyG gcn_norm (scatter-add of
    duplicate edges, add-*remaining*-self-loops).  The final cast is fused with
    the normalization so bf16 output never materializes an extra f32 copy."""
    src, dst = edge_index[0], edge_index[1]
    adj = jnp.zeros((num_nodes, num_nodes), jnp.float32).at[dst, src].add(1.0)
    missing_loop = jnp.where(jnp.diagonal(adj) > 0, 0.0, 1.0)
    adj = adj + jnp.diag(missing_loop)
    deg = jnp.sum(adj, axis=1)
    dinv_sqrt = jnp.where(deg > 0, jax.lax.rsqrt(deg), 0.0)
    # TODO(synk): for very large graphs, build blockwise / block-CSR instead of
    # the dense O(N^2) f32 intermediate.
    return (dinv_sqrt[:, None] * adj * dinv_sqrt[None, :]).astype(out_dtype)


def build_pool_matrix(batch, num_graphs):
    """P[g, n] = 1/|graph g| if batch[n] == g else 0  (global_mean_pool)."""
    onehot = (batch[None, :] == jnp.arange(num_graphs)[:, None]).astype(jnp.float32)
    counts = jnp.sum(onehot, axis=1, keepdims=True)
    return onehot / jnp.maximum(counts, 1.0)


def build_block_structure(edge_index, n, n_pad, tile):
    """Host-side block sparsity of A_hat: per row tile, a compacted (clamped)
    list of nonzero column-tile indices plus its length.  Fed via scalar
    prefetch so empty (tile,tile) blocks are never matmul'd and padded
    reduction steps re-use the previous A tile (no extra DMA)."""
    num_t = n_pad // tile
    src = np.asarray(edge_index[0])
    dst = np.asarray(edge_index[1])
    nz = np.zeros((num_t, num_t), dtype=bool)
    nz[dst // tile, src // tile] = True
    diag = np.arange(n) // tile            # self-loops make diagonal blocks dense
    nz[diag, diag] = True
    cnt = nz.sum(axis=1).astype(np.int32)
    max_cnt = int(max(int(cnt.max()), 1))
    cols = np.zeros((num_t, max_cnt), dtype=np.int32)
    for i in range(num_t):
        idx = np.nonzero(nz[i])[0]
        if idx.size:
            cols[i, : idx.size] = idx
            cols[i, idx.size:] = idx[-1]   # clamp -> repeated block idx, no re-DMA
    return jnp.asarray(cnt), jnp.asarray(cols), max_cnt


def _pad2d(x, rows, cols):
    return jnp.pad(x, ((0, rows - x.shape[0]), (0, cols - x.shape[1])))


def gcn_forward(params, x, edge_index, batch, num_graphs, *, tile=None):
    """Full forward pass.  tile=None -> auto (fused single kernel when the
    padded graph fits VMEM, generation-sized tiles otherwise); tile=<multiple
    of 128> forces the tiled path (used by the test to exercise a multi-tile
    grid at small shapes; production sizes come from _tpu_config)."""
    cfg = _tpu_config()
    n, f = x.shape
    hidden = params["w1"].shape[1]
    num_classes = params["w2"].shape[1]

    a_hat = build_normalized_adjacency(edge_index, n, out_dtype=jnp.bfloat16)
    pool_mat = build_pool_matrix(batch, num_graphs)

    f_pad = _round_up(f, _LANE)
    h_pad = _round_up(hidden, _LANE)
    c_pad = _round_up(num_classes, _LANE)
    g_pad = _round_up(num_graphs, _SUBLANE)
    n_pad = _round_up(max(n, _LANE), _LANE)

    fused = tile is None and n_pad <= cfg["fused_max"]
    if not fused:
        tm = tile if tile is not None else cfg["tile"]
        assert tm % _LANE == 0, "tile must be a multiple of 128"
        n_pad = _round_up(n_pad, tm)

    a_p = _pad2d(a_hat, n_pad, n_pad)                              # bf16
    x_p = _pad2d(x, n_pad, f_pad).astype(jnp.bfloat16)
    w1_p = _pad2d(params["w1"], f_pad, h_pad).astype(jnp.bfloat16)
    b1_p = jnp.pad(params["b1"], (0, h_pad - hidden)).reshape(1, h_pad).astype(jnp.float32)
    w2_p = _pad2d(params["w2"], h_pad, c_pad).astype(jnp.bfloat16)
    b2_p = jnp.pad(params["b2"], (0, c_pad - num_classes)).reshape(1, c_pad).astype(jnp.float32)
    p_p = _pad2d(pool_mat, g_pad, n_pad).astype(jnp.float32)

    if fused:
        out = gcn_fused_small(a_p, x_p, w1_p, b1_p, w2_p, b2_p, p_p,
                              num_classes=num_classes,
                              vmem_limit=cfg["vmem_limit"])
    else:
        cnt, cols, max_cnt = build_block_structure(edge_index, n, n_pad, tm)
        xw = compute_xw(x_p, w1_p, tr=tm, vmem_limit=cfg["vmem_limit"])
        hw = gcn_layer1(cnt, cols, a_p, xw, w2_p, b1_p,
                        tm=tm, tk=tm, max_cnt=max_cnt,
                        vmem_limit=cfg["vmem_limit"])
        part = gcn_layer2_pool(cnt, cols, a_p, hw, b2_p, p_p,
                               tm=tm, tk=tm, max_cnt=max_cnt,
                               vmem_limit=cfg["vmem_limit"])
        out = pool_finalize(part, num_classes=num_classes,
                            vmem_limit=cfg["vmem_limit"])
    return out[:num_graphs, :num_classes]


def gcn_forward_ref(params, x, edge_index, batch, num_graphs):
    """Pure-JAX f32 reference (same graph densification)."""
    a = build_normalized_adjacency(edge_index, x.shape[0])
    p = build_pool_matrix(batch, num_graphs)
    h = jnp.maximum(a @ (x @ params["w1"]) + params["b1"], 0.0)
    h = a @ (h @ params["w2"]) + params["b2"]
    return jax.nn.log_softmax(p @ h, axis=1)


def init_params(key, num_features, hidden, num_classes):
    k1, k2 = jax.random.split(key)
    glorot = lambda k, fi, fo: jax.random.uniform(
        k, (fi, fo), jnp.float32, -1.0, 1.0
    ) * jnp.sqrt(6.0 / (fi + fo))
    return {
        "w1": glorot(k1, num_features, hidden),
        "b1": jnp.zeros((hidden,), jnp.float32),
        "w2": glorot(k2, hidden, num_classes),
        "b2": jnp.zeros((num_classes,), jnp.float32),
    }


# ------------------------------- Main ----------------------------------------

if __name__ == "__main__":
    NUM_FEATURES, HIDDEN, NUM_CLASSES = 8, 32, 4

    key = jax.random.PRNGKey(0)
    kx, ke, kp, kx2, kea, keb = jax.random.split(key, 6)
    params = init_params(kp, NUM_FEATURES, HIDDEN, NUM_CLASSES)

    # --- small graph: exercises the fully fused single-launch path -----------
    N1, E1, G1 = 16, 40, 2
    x1 = jax.random.normal(kx, (N1, NUM_FEATURES), jnp.float32)
    ei1 = jax.random.randint(ke, (2, E1), 0, N1, jnp.int32)
    batch1 = jnp.concatenate(
        [jnp.zeros((N1 // 2,), jnp.int32), jnp.ones((N1 - N1 // 2,), jnp.int32)]
    )
    out1 = jax.block_until_ready(gcn_forward(params, x1, ei1, batch1, G1))
    ref1 = gcn_forward_ref(params, x1, ei1, batch1, G1)
    assert out1.shape == (G1, NUM_CLASSES)
    assert bool(jnp.all(jnp.isfinite(out1)))
    assert bool(jnp.allclose(out1, ref1, atol=1e-1)), (out1, ref1)

    # --- larger graph, two disconnected communities: exercises the tiled path
    # (3x3 block grid, scalar-prefetched block-sparse skipping, accumulators,
    # per-row-tile partial pooling + finalize kernel).  tile=256 is only to get
    # a multi-tile grid at test scale; auto selection uses _tpu_config tiles.
    N2, E2, G2 = 600, 900, 3
    x2 = jax.random.normal(kx2, (N2, NUM_FEATURES), jnp.float32)
    ei_a = jax.random.randint(kea, (2, E2 // 2), 0, N2 // 2, jnp.int32)
    ei_b = jax.random.randint(keb, (2, E2 // 2), N2 // 2, N2, jnp.int32)
    ei2 = jnp.concatenate([ei_a, ei_b], axis=1)
    batch2 = jnp.minimum(jnp.arange(N2) * G2 // N2, G2 - 1).astype(jnp.int32)
    out2 = jax.block_until_ready(
        gcn_forward(params, x2, ei2, batch2, G2, tile=256)
    )
    ref2 = gcn_forward_ref(params, x2, ei2, batch2, G2)
    assert out2.shape == (G2, NUM_CLASSES)
    assert bool(jnp.all(jnp.isfinite(out2)))
    assert bool(jnp.allclose(out2, ref2, atol=1e-1)), (out2, ref2)

    print("KERNEL_OK")
</pallas_src>

<mosaic_0001>
module attributes {stable_mosaic.version = 11 : i64} {
  func.func @gcn_fused_kernel(%arg0: memref<128x128xbf16, #tpu.memory_space<vmem>>, %arg1: memref<128x128xbf16, #tpu.memory_space<vmem>>, %arg2: memref<128x128xbf16, #tpu.memory_space<vmem>>, %arg3: memref<1x128xf32, #tpu.memory_space<vmem>>, %arg4: memref<128x128xbf16, #tpu.memory_space<vmem>>, %arg5: memref<1x128xf32, #tpu.memory_space<vmem>>, %arg6: memref<8x128xf32, #tpu.memory_space<vmem>>, %arg7: memref<8x128xf32, #tpu.memory_space<vmem>>) attributes {dimension_semantics = [], scalar_prefetch = 0 : i64, scratch_operands = 0 : i64, tpu.core_type = #tpu.core_type<tc>} {
    %c0 = arith.constant 0 : index
    %c0_0 = arith.constant 0 : index
    %0 = vector.load %arg0[%c0, %c0_0] : memref<128x128xbf16, #tpu.memory_space<vmem>>, vector<128x128xbf16>
    %c0_1 = arith.constant 0 : index
    %c0_2 = arith.constant 0 : index
    %1 = vector.load %arg1[%c0_1, %c0_2] : memref<128x128xbf16, #tpu.memory_space<vmem>>, vector<128x128xbf16>
    %c0_3 = arith.constant 0 : index
    %c0_4 = arith.constant 0 : index
    %2 = vector.load %arg2[%c0_3, %c0_4] : memref<128x128xbf16, #tpu.memory_space<vmem>>, vector<128x128xbf16>
    %cst = arith.constant dense<0.000000e+00> : vector<128x128xf32>
    %3 = tpu.matmul %1, %2, %cst {dimension_numbers = #tpu.dot_dimension_numbers<[1], [0], [0], [1], [0, 0, 1, 1], [], []>} : vector<128x128xbf16>, vector<128x128xbf16>, vector<128x128xf32> -> vector<128x128xf32>
    %4 = arith.truncf %3 : vector<128x128xf32> to vector<128x128xbf16>
    %cst_5 = arith.constant dense<0.000000e+00> : vector<128x128xf32>
    %5 = tpu.matmul %0, %4, %cst_5 {dimension_numbers = #tpu.dot_dimension_numbers<[1], [0], [0], [1], [0, 0, 1, 1], [], []>} : vector<128x128xbf16>, vector<128x128xbf16>, vector<128x128xf32> -> vector<128x128xf32>
    %c0_6 = arith.constant 0 : index
    %c0_7 = arith.constant 0 : index
    %6 = vector.load %arg3[%c0_6, %c0_7] : memref<1x128xf32, #tpu.memory_space<vmem>>, vector<1x128xf32>
    %7 = vector.broadcast %6 : vector<1x128xf32> to vector<128x128xf32>
    %8 = arith.addf %5, %7 : vector<128x128xf32>
    %cst_8 = arith.constant 0.000000e+00 : f32
    %9 = vector.broadcast %cst_8 : f32 to vector<128x128xf32>
    %10 = arith.maximumf %8, %9 : vector<128x128xf32>
    %11 = arith.truncf %10 : vector<128x128xf32> to vector<128x128xbf16>
    %c0_9 = arith.constant 0 : index
    %c0_10 = arith.constant 0 : index
    %12 = vector.load %arg4[%c0_9, %c0_10] : memref<128x128xbf16, #tpu.memory_space<vmem>>, vector<128x128xbf16>
    %cst_11 = arith.constant dense<0.000000e+00> : vector<128x128xf32>
    %13 = tpu.matmul %11, %12, %cst_11 {dimension_numbers = #tpu.dot_dimension_numbers<[1], [0], [0], [1], [0, 0, 1, 1], [], []>} : vector<128x128xbf16>, vector<128x128xbf16>, vector<128x128xf32> -> vector<128x128xf32>
    %14 = arith.truncf %13 : vector<128x128xf32> to vector<128x128xbf16>
    %cst_12 = arith.constant dense<0.000000e+00> : vector<128x128xf32>
    %15 = tpu.matmul %0, %14, %cst_12 {dimension_numbers = #tpu.dot_dimension_numbers<[1], [0], [0], [1], [0, 0, 1, 1], [], []>} : vector<128x128xbf16>, vector<128x128xbf16>, vector<128x128xf32> -> vector<128x128xf32>
    %c0_13 = arith.constant 0 : index
    %c0_14 = arith.constant 0 : index
    %16 = vector.load %arg5[%c0_13, %c0_14] : memref<1x128xf32, #tpu.memory_space<vmem>>, vector<1x128xf32>
    %17 = vector.broadcast %16 : vector<1x128xf32> to vector<128x128xf32>
    %18 = arith.addf %15, %17 : vector<128x128xf32>
    %c0_15 = arith.constant 0 : index
    %c0_16 = arith.constant 0 : index
    %19 = vector.load %arg6[%c0_15, %c0_16] : memref<8x128xf32, #tpu.memory_space<vmem>>, vector<8x128xf32>
    %cst_17 = arith.constant dense<0.000000e+00> : vector<8x128xf32>
    %20 = tpu.matmul %19, %18, %cst_17 {dimension_numbers = #tpu.dot_dimension_numbers<[1], [0], [0], [1], [0, 0, 1, 1], [], []>} : vector<8x128xf32>, vector<128x128xf32>, vector<8x128xf32> -> vector<8x128xf32>
    %21 = tpu.iota {dimensions = array<i32: 1>} : vector<8x128xi32>
    %c4_i32 = arith.constant 4 : i32
    %22 = vector.broadcast %c4_i32 : i32 to vector<8x128xi32>
    %23 = arith.cmpi slt, %21, %22 : vector<8x128xi32>
    %cst_18 = arith.constant -1.000000e+30 : f32
    %24 = vector.broadcast %cst_18 : f32 to vector<8x128xf32>
    %25 = arith.select %23, %20, %24 : vector<8x128xi1>, vector<8x128xf32>
    %cst_19 = arith.constant dense<0xFF800000> : vector<8xf32>
    %26 = vector.multi_reduction <maximumf>, %25, %cst_19 [1] : vector<8x128xf32> to vector<8xf32>
    %27 = vector.shape_cast %26 : vector<8xf32> to vector<8x1xf32>
    %28 = vector.broadcast %27 : vector<8x1xf32> to vector<8x128xf32>
    %29 = arith.subf %25, %28 : vector<8x128xf32>
    %30 = math.exp %29 : vector<8x128xf32>
    %cst_20 = arith.constant 0.000000e+00 : f32
    %31 = vector.broadcast %cst_20 : f32 to vector<8x128xf32>
    %32 = arith.select %23, %30, %31 : vector<8x128xi1>, vector<8x128xf32>
    %cst_21 = arith.constant dense<0.000000e+00> : vector<8xf32>
    %33 = vector.multi_reduction <add>, %32, %cst_21 [1] : vector<8x128xf32> to vector<8xf32>
    %34 = vector.shape_cast %33 : vector<8xf32> to vector<8x1xf32>
    %35 = math.log %34 : vector<8x1xf32>
    %36 = vector.broadcast %35 : vector<8x1xf32> to vector<8x128xf32>
    %37 = arith.subf %29, %36 : vector<8x128xf32>
    %c0_22 = arith.constant 0 : index
    %c0_23 = arith.constant 0 : index
    %38 = vector.load %arg7[%c0_22, %c0_23] : memref<8x128xf32, #tpu.memory_space<vmem>>, vector<8x128xf32>
    tpu.vector_store %arg7[%c0_22, %c0_23], %37 {strides = array<i32>} : memref<8x128xf32, #tpu.memory_space<vmem>>, vector<8x128xf32>,
    return
  }
}

</mosaic_0001>

<llo_original>
// kernel: tpu_custom_call.1
$region0: #{tpu_custom_call.1}
  #allocation0 [shape = 'u32[]', space=smem, size = 0x4, offset = 0x4, fixed_abs, tag = 'smem constant byte address 0x4 - core index']
  #allocation1 [shape = 'u32[72,128]{1,0:T(1,128)}', space=vmem, size = 0x9000, scoped, tag = 'internal scratch']
  %s0 = inlined_call_operand.hbm [shape: bf16[128,128], index: 0, kind: input, shape index: {}]
  %s1 = inlined_call_operand.hbm [shape: bf16[128,128], index: 1, kind: input, shape index: {}]
  %s2 = inlined_call_operand.hbm [shape: bf16[128,128], index: 2, kind: input, shape index: {}]
  %s3 = inlined_call_operand.vmem [shape: f32[1,128], index: 3, kind: input, shape index: {}]
  %s4 = inlined_call_operand.hbm [shape: bf16[128,128], index: 4, kind: input, shape index: {}]
  %s5 = inlined_call_operand.vmem [shape: f32[1,128], index: 5, kind: input, shape index: {}]
  %s6 = inlined_call_operand.hbm [shape: f32[8,128], index: 6, kind: input, shape index: {}]
  %s7 = inlined_call_operand.hbm [shape: f32[8,128], index: 7, kind: output, shape index: {}]
  %s8 = sld [smem:[#allocation0]]
  $region58: #{tpu_custom_call.1} parent=0
    _
  %s10 = ssub.s32 1, %s8
  %s11 = scalar_select 0, %s10, %s8
  $region1: #{tpu_custom_call.1} parent=0
    #allocation2 [shape = 'u8[32768]{0}', space=vmem, size = 0x8000, scoped, tag = 'input window, operand 0, single buffered']
    #allocation3 [shape = 's32[1]{0}', space=sflag, size = 0x4, scoped, tag = 'scoped memory for tpu_custom_call.1']
    #allocation4 [shape = 's32[1]{0}', space=sflag, size = 0x4, scoped, tag = 'scoped memory for tpu_custom_call.1']
    #allocation5 [shape = 'u8[32768]{0}', space=vmem, size = 0x8000, scoped, tag = 'input window, operand 1, single buffered']
    #allocation6 [shape = 's32[1]{0}', space=sflag, size = 0x4, scoped, tag = 'scoped memory for tpu_custom_call.1']
    #allocation7 [shape = 'u8[32768]{0}', space=vmem, size = 0x8000, scoped, tag = 'input window, operand 2, single buffered']
    #allocation8 [shape = 'u8[32768]{0}', space=vmem, size = 0x8000, scoped, tag = 'input window, operand 4, single buffered']
    #allocation9 [shape = 's32[1]{0}', space=sflag, size = 0x4, scoped, tag = 'scoped memory for tpu_custom_call.1']
    #allocation10 [shape = 'u8[4096]{0}', space=vmem, size = 0x1000, scoped, tag = 'input window, operand 6, single buffered']
    #allocation11 [shape = 'u8[4096]{0}', space=vmem, size = 0x1000, scoped, tag = 'output window, operand 0, single buffered']
    %12 = vsyncpa [#allocation3], 0
    %13 = vsyncpa [#allocation6], 0
    %14 = vsyncpa [#allocation9], 0
    %15 = vsyncpa [#allocation4], 0
    // Predicated region
    $region2: #{tpu_custom_call.1} parent=1 // pred_check
      _
    $region3: #{tpu_custom_call.1} parent=1 // pred_check_branch
      %17 = sbr.rel (0) target = $region5
    $region4: #{tpu_custom_call.1} parent=1 // pred_region
      %19 = vsyncadd [#allocation3], 0
      %s20 = sshll.u32 %s0, 4
      %s21 = int_to_ptr.hbm [resolvable:$true] %s20
      %s22 = sshll.u32 [#allocation2], 4
      %s23 = int_to_ptr.vmem [resolvable:$true] %s22
      %28 = dma.hbm_to_vmem [thread:$0]  %s21, 1024, %s23, [#allocation3], 64, 64, 4
    $region5: #{tpu_custom_call.1} parent=1 // pred_fallthru
      _
    // Predicated region
    $region6: #{tpu_custom_call.1} parent=1 // pred_check
      _
    $region7: #{tpu_custom_call.1} parent=1 // pred_check_branch
      %30 = sbr.rel (0) target = $region9
    $region8: #{tpu_custom_call.1} parent=1 // pred_region
      %32 = vsyncadd [#allocation6], 0
      %s33 = sshll.u32 %s1, 4
      %s34 = int_to_ptr.hbm [resolvable:$true] %s33
      %s35 = sshll.u32 [#allocation5], 4
      %s36 = int_to_ptr.vmem [resolvable:$true] %s35
      %41 = dma.hbm_to_vmem [thread:$0]  %s34, 1024, %s36, [#allocation6], 64, 64, 4
    $region9: #{tpu_custom_call.1} parent=1 // pred_fallthru
      _
    // Predicated region
    $region10: #{tpu_custom_call.1} parent=1 // pred_check
      _
    $region11: #{tpu_custom_call.1} parent=1 // pred_check_branch
      %43 = sbr.rel (0) target = $region13
    $region12: #{tpu_custom_call.1} parent=1 // pred_region
      %45 = vsyncadd [#allocation6], 0
      %s46 = sshll.u32 %s2, 4
      %s47 = int_to_ptr.hbm [resolvable:$true] %s46
      %s48 = sshll.u32 [#allocation7], 4
      %s49 = int_to_ptr.vmem [resolvable:$true] %s48
      %54 = dma.hbm_to_vmem [thread:$0]  %s47, 1024, %s49, [#allocation6], 64, 64, 4
    $region13: #{tpu_custom_call.1} parent=1 // pred_fallthru
      _
    // Predicated region
    $region14: #{tpu_custom_call.1} parent=1 // pred_check
      _
    $region15: #{tpu_custom_call.1} parent=1 // pred_check_branch
      %56 = sbr.rel (0) target = $region17
    $region16: #{tpu_custom_call.1} parent=1 // pred_region
      _
    $region17: #{tpu_custom_call.1} parent=1 // pred_fallthru
      _
    // Predicated region
    $region18: #{tpu_custom_call.1} parent=1 // pred_check
      _
    $region19: #{tpu_custom_call.1} parent=1 // pred_check_branch
      %58 = sbr.rel (0) target = $region21
    $region20: #{tpu_custom_call.1} parent=1 // pred_region
      %60 = vsyncadd [#allocation9], 0
      %s61 = sshll.u32 %s4, 4
      %s62 = int_to_ptr.hbm [resolvable:$true] %s61
      %s63 = sshll.u32 [#allocation8], 4
      %s64 = int_to_ptr.vmem [resolvable:$true] %s63
      %69 = dma.hbm_to_vmem [thread:$0]  %s62, 1024, %s64, [#allocation9], 64, 64, 4
    $region21: #{tpu_custom_call.1} parent=1 // pred_fallthru
      _
    // Predicated region
    $region22: #{tpu_custom_call.1} parent=1 // pred_check
      _
    $region23: #{tpu_custom_call.1} parent=1 // pred_check_branch
      %71 = sbr.rel (0) target = $region25
    $region24: #{tpu_custom_call.1} parent=1 // pred_region
      _
    $region25: #{tpu_custom_call.1} parent=1 // pred_fallthru
      _
    // Predicated region
    $region26: #{tpu_custom_call.1} parent=1 // pred_check
      _
    $region27: #{tpu_custom_call.1} parent=1 // pred_check_branch
      %73 = sbr.rel (0) target = $region29
    $region28: #{tpu_custom_call.1} parent=1 // pred_region
      %75 = vsyncadd [#allocation9], 0
      %s77 = sshll.u32 %s6, 4
      %s78 = int_to_ptr.hbm [resolvable:$true] %s77
      %s79 = sshll.u32 [#allocation10], 4
      %s80 = int_to_ptr.vmem [resolvable:$true] %s79
      %82 = dma.hbm_to_vmem [thread:$0]  %s78, 128, %s80, [#allocation9]
    $region29: #{tpu_custom_call.1} parent=1 // pred_fallthru
      _
    // Predicated region
    $region30: #{tpu_custom_call.1} parent=1 // pred_check
      _
    $region31: #{tpu_custom_call.1} parent=1 // pred_check_branch
      %84 = sbr.rel (0) target = $region33
    $region32: #{tpu_custom_call.1} parent=1 // pred_region
      %86 = dma.done [#allocation3], 1024
    $region33: #{tpu_custom_call.1} parent=1 // pred_fallthru
      _
    // Predicated region
    $region34: #{tpu_custom_call.1} parent=1 // pred_check
      _
    $region35: #{tpu_custom_call.1} parent=1 // pred_check_branch
      %88 = sbr.rel (0) target = $region37
    $region36: #{tpu_custom_call.1} parent=1 // pred_region
      %90 = dma.done [#allocation6], 1024
    $region37: #{tpu_custom_call.1} parent=1 // pred_fallthru
      _
    // Predicated region
    $region38: #{tpu_custom_call.1} parent=1 // pred_check
      _
    $region39: #{tpu_custom_call.1} parent=1 // pred_check_branch
      %92 = sbr.rel (0) target = $region41
    $region40: #{tpu_custom_call.1} parent=1 // pred_region
      %94 = dma.done [#allocation6], 1024
    $region41: #{tpu_custom_call.1} parent=1 // pred_fallthru
      _
    // Predicated region
    $region42: #{tpu_custom_call.1} parent=1 // pred_check
      _
    $region43: #{tpu_custom_call.1} parent=1 // pred_check_branch
      %96 = sbr.rel (0) target = $region45
    $region44: #{tpu_custom_call.1} parent=1 // pred_region
      %98 = dma.done [#allocation9], 1024
    $region45: #{tpu_custom_call.1} parent=1 // pred_fallthru
      _
    // Predicated region
    $region46: #{tpu_custom_call.1} parent=1 // pred_check
      _
    $region47: #{tpu_custom_call.1} parent=1 // pred_check_branch
      %100 = sbr.rel (0) target = $region49
    $region48: #{tpu_custom_call.1} parent=1 // pred_region
      %102 = dma.done [#allocation9], 128
    $region49: #{tpu_custom_call.1} parent=1 // pred_fallthru
      _
    %v103 = vld [vmem:[#allocation2] sm:$0xf]
    %v104 = vld [vmem:[#allocation2 + $0x4] sm:$0xf]
    %v105 = vld [vmem:[#allocation2 + $0x8] sm:$0xf]
    %v106 = vld [vmem:[#allocation2 + $0xc] sm:$0xf]
    %v107 = vld [vmem:[#allocation2 + $0x10] sm:$0xf]
    %v108 = vld [vmem:[#allocation2 + $0x14] sm:$0xf]
    %v109 = vld [vmem:[#allocation2 + $0x18] sm:$0xf]
    %v110 = vld [vmem:[#allocation2 + $0x1c] sm:$0xf]
    %v111 = vld [vmem:[#allocation2 + $0x20] sm:$0xf]
    %v112 = vld [vmem:[#allocation2 + $0x24] sm:$0xf]
    %v113 = vld [vmem:[#allocation2 + $0x28] sm:$0xf]
    %v114 = vld [vmem:[#allocation2 + $0x2c] sm:$0xf]
    %v115 = vld [vmem:[#allocation2 + $0x30] sm:$0xf]
    %v116 = vld [vmem:[#allocation2 + $0x34] sm:$0xf]
    %v117 = vld [vmem:[#allocation2 + $0x38] sm:$0xf]
    %v118 = vld [vmem:[#allocation2 + $0x3c] sm:$0xf]
    %v119 = vld [vmem:[#allocation5] sm:$0xf]
    %v120 = vld [vmem:[#allocation5 + $0x4] sm:$0xf]
    %v121 = vld [vmem:[#allocation5 + $0x8] sm:$0xf]
    %v122 = vld [vmem:[#allocation5 + $0xc] sm:$0xf]
    %v123 = vld [vmem:[#allocation5 + $0x10] sm:$0xf]
    %v124 = vld [vmem:[#allocation5 + $0x14] sm:$0xf]
    %v125 = vld [vmem:[#allocation5 + $0x18] sm:$0xf]
    %v126 = vld [vmem:[#allocation5 + $0x1c] sm:$0xf]
    %v127 = vld [vmem:[#allocation5 + $0x20] sm:$0xf]
    %v128 = vld [vmem:[#allocation5 + $0x24] sm:$0xf]
    %v129 = vld [vmem:[#allocation5 + $0x28] sm:$0xf]
    %v130 = vld [vmem:[#allocation5 + $0x2c] sm:$0xf]
    %v131 = vld [vmem:[#allocation5 + $0x30] sm:$0xf]
    %v132 = vld [vmem:[#allocation5 + $0x34] sm:$0xf]
    %v133 = vld [vmem:[#allocation5 + $0x38] sm:$0xf]
    %v134 = vld [vmem:[#allocation5 + $0x3c] sm:$0xf]
    %v135 = vld [vmem:[#allocation7] sm:$0xf]
    %v136 = vld [vmem:[#allocation7 + $0x4] sm:$0xf]
    %v137 = vld [vmem:[#allocation7 + $0x8] sm:$0xf]
    %v138 = vld [vmem:[#allocation7 + $0xc] sm:$0xf]
    %v139 = vld [vmem:[#allocation7 + $0x10] sm:$0xf]
    %v140 = vld [vmem:[#allocation7 + $0x14] sm:$0xf]
    %v141 = vld [vmem:[#allocation7 + $0x18] sm:$0xf]
    %v142 = vld [vmem:[#allocation7 + $0x1c] sm:$0xf]
    %v143 = vld [vmem:[#allocation7 + $0x20] sm:$0xf]
    %v144 = vld [vmem:[#allocation7 + $0x24] sm:$0xf]
    %v145 = vld [vmem:[#allocation7 + $0x28] sm:$0xf]
    %v146 = vld [vmem:[#allocation7 + $0x2c] sm:$0xf]
    %v147 = vld [vmem:[#allocation7 + $0x30] sm:$0xf]
    %v148 = vld [vmem:[#allocation7 + $0x34] sm:$0xf]
    %v149 = vld [vmem:[#allocation7 + $0x38] sm:$0xf]
    %v150 = vld [vmem:[#allocation7 + $0x3c] sm:$0xf]
    %v167 = vunpack.c.l.b16 %v119
    %v168 = vunpack.c.l.b16 %v120
    %v169 = vunpack.c.l.b16 %v121
    %v170 = vunpack.c.l.b16 %v122
    %v171 = vunpack.c.l.b16 %v123
    %v172 = vunpack.c.l.b16 %v124
    %v173 = vunpack.c.l.b16 %v125
    %v174 = vunpack.c.l.b16 %v126
    %v175 = vunpack.c.l.b16 %v127
    %v176 = vunpack.c.l.b16 %v128
    %v177 = vunpack.c.l.b16 %v129
    %v178 = vunpack.c.l.b16 %v130
    %v179 = vunpack.c.l.b16 %v131
    %v180 = vunpack.c.l.b16 %v132
    %v181 = vunpack.c.l.b16 %v133
    %v182 = vunpack.c.l.b16 %v134
    %v183 = vpack.c.b16 %v168, %v167
    %v184 = vpack.c.b16 %v170, %v169
    %v185 = vpack.c.b16 %v172, %v171
    %v186 = vpack.c.b16 %v174, %v173
    %v187 = vpack.c.b16 %v176, %v175
    %v188 = vpack.c.b16 %v178, %v177
    %v189 = vpack.c.b16 %v180, %v179
    %v190 = vpack.c.b16 %v182, %v181
    %v215 = vunpack.c.l.b16 %v135
    %v216 = vunpack.c.l.b16 %v136
    %v217 = vunpack.c.l.b16 %v137
    %v218 = vunpack.c.l.b16 %v138
    %v219 = vunpack.c.l.b16 %v139
    %v220 = vunpack.c.l.b16 %v140
    %v221 = vunpack.c.l.b16 %v141
    %v222 = vunpack.c.l.b16 %v142
    %v223 = vunpack.c.l.b16 %v143
    %v224 = vunpack.c.l.b16 %v144
    %v225 = vunpack.c.l.b16 %v145
    %v226 = vunpack.c.l.b16 %v146
    %v227 = vunpack.c.l.b16 %v147
    %v228 = vunpack.c.l.b16 %v148
    %v229 = vunpack.c.l.b16 %v149
    %v230 = vunpack.c.l.b16 %v150
    %v231 = vpack.c.b16 %v216, %v215
    %v232 = vpack.c.b16 %v218, %v217
    %v233 = vpack.c.b16 %v220, %v219
    %v234 = vpack.c.b16 %v222, %v221
    %v235 = vpack.c.b16 %v224, %v223
    %v236 = vpack.c.b16 %v226, %v225
    %v237 = vpack.c.b16 %v228, %v227
    %v238 = vpack.c.b16 %v230, %v229
    %247 = vmatpush.bf16.msra.mxu0 %v238
    %248 = vmatpush.bf16.msra.mxu0 %v237
    %249 = vmatpush.bf16.msra.mxu0 %v236
    %250 = vmatpush.bf16.msra.mxu0 %v235
    %251 = vmatpush.bf16.msra.mxu0 %v234
    %252 = vmatpush.bf16.msra.mxu0 %v233
    %253 = vmatpush.bf16.msra.mxu0 %v232
    %254 = vmatpush.bf16.msra.mxu0 %v231
    %255 = vmatmul.bf16.gmra.mxu0 %v183
    %v256 = vpop.f32.mrf.mxu0
    %v257 = vadd.f32 0.0, %v256
    %v258 = vpop.f32.mrf.mxu0
    %v259 = vadd.f32 0.0, %v258
    %260 = vmatmul.bf16.gmra.mxu0 %v184
    %v261 = vpop.f32.mrf.mxu0
    %v262 = vadd.f32 0.0, %v261
    %v263 = vpop.f32.mrf.mxu0
    %v264 = vadd.f32 0.0, %v263
    %265 = vmatmul.bf16.gmra.mxu0 %v185
    %v266 = vpop.f32.mrf.mxu0
    %v267 = vadd.f32 0.0, %v266
    %v268 = vpop.f32.mrf.mxu0
    %v269 = vadd.f32 0.0, %v268
    %270 = vmatmul.bf16.gmra.mxu0 %v186
    %v271 = vpop.f32.mrf.mxu0
    %v272 = vadd.f32 0.0, %v271
    %v273 = vpop.f32.mrf.mxu0
    %v274 = vadd.f32 0.0, %v273
    %275 = vmatmul.bf16.gmra.mxu0 %v187
    %v276 = vpop.f32.mrf.mxu0
    %v277 = vadd.f32 0.0, %v276
    %v278 = vpop.f32.mrf.mxu0
    %v279 = vadd.f32 0.0, %v278
    %280 = vmatmul.bf16.gmra.mxu0 %v188
    %v281 = vpop.f32.mrf.mxu0
    %v282 = vadd.f32 0.0, %v281
    %v283 = vpop.f32.mrf.mxu0
    %v284 = vadd.f32 0.0, %v283
    %285 = vmatmul.bf16.gmra.mxu0 %v189
    %v286 = vpop.f32.mrf.mxu0
    %v287 = vadd.f32 0.0, %v286
    %v288 = vpop.f32.mrf.mxu0
    %v289 = vadd.f32 0.0, %v288
    %290 = vmatmul.bf16.gmra.mxu0 %v190
    %v291 = vpop.f32.mrf.mxu0
    %v292 = vadd.f32 0.0, %v291
    %v293 = vpop.f32.mrf.mxu0
    %v294 = vadd.f32 0.0, %v293
    %295 = vdwg.mxu0
    %v296 = vpack.c.bf16 %v259, %v257
    %v297 = vpack.c.bf16 %v264, %v262
    %v298 = vpack.c.bf16 %v269, %v267
    %v299 = vpack.c.bf16 %v274, %v272
    %v300 = vpack.c.bf16 %v279, %v277
    %v301 = vpack.c.bf16 %v284, %v282
    %v302 = vpack.c.bf16 %v289, %v287
    %v303 = vpack.c.bf16 %v294, %v292
    %v304 = vld [vmem:[%s3] sm:$0x1]
    %v306 = vperm.slane %v304, 0
    %v324 = vunpack.c.l.b16 %v103
    %v325 = vunpack.c.l.b16 %v104
    %v326 = vunpack.c.l.b16 %v105
    %v327 = vunpack.c.l.b16 %v106
    %v328 = vunpack.c.l.b16 %v107
    %v329 = vunpack.c.l.b16 %v108
    %v330 = vunpack.c.l.b16 %v109
    %v331 = vunpack.c.l.b16 %v110
    %v332 = vunpack.c.l.b16 %v111
    %v333 = vunpack.c.l.b16 %v112
    %v334 = vunpack.c.l.b16 %v113
    %v335 = vunpack.c.l.b16 %v114
    %v336 = vunpack.c.l.b16 %v115
    %v337 = vunpack.c.l.b16 %v116
    %v338 = vunpack.c.l.b16 %v117
    %v339 = vunpack.c.l.b16 %v118
    %v340 = vpack.c.b16 %v325, %v324
    %v341 = vpack.c.b16 %v327, %v326
    %v342 = vpack.c.b16 %v329, %v328
    %v343 = vpack.c.b16 %v331, %v330
    %v344 = vpack.c.b16 %v333, %v332
    %v345 = vpack.c.b16 %v335, %v334
    %v346 = vpack.c.b16 %v337, %v336
    %v347 = vpack.c.b16 %v339, %v338
    %356 = vmatpush.bf16.msra.mxu0 %v303
    %357 = vmatpush.bf16.msra.mxu0 %v302
    %358 = vmatpush.bf16.msra.mxu0 %v301
    %359 = vmatpush.bf16.msra.mxu0 %v300
    %360 = vmatpush.bf16.msra.mxu0 %v299
    %361 = vmatpush.bf16.msra.mxu0 %v298
    %362 = vmatpush.bf16.msra.mxu0 %v297
    %363 = vmatpush.bf16.msra.mxu0 %v296
    %364 = vmatmul.bf16.gmra.mxu0 %v340
    %v365 = vpop.f32.mrf.mxu0
    %v366 = vadd.f32 %v306, %v365
    %v367 = vpop.f32.mrf.mxu0
    %v368 = vadd.f32 %v306, %v367
    %369 = vmatmul.bf16.gmra.mxu0 %v341
    %v370 = vpop.f32.mrf.mxu0
    %v371 = vadd.f32 %v306, %v370
    %v372 = vpop.f32.mrf.mxu0
    %v373 = vadd.f32 %v306, %v372
    %374 = vmatmul.bf16.gmra.mxu0 %v342
    %v375 = vpop.f32.mrf.mxu0
    %v376 = vadd.f32 %v306, %v375
    %v377 = vpop.f32.mrf.mxu0
    %v378 = vadd.f32 %v306, %v377
    %379 = vmatmul.bf16.gmra.mxu0 %v343
    %v380 = vpop.f32.mrf.mxu0
    %v381 = vadd.f32 %v306, %v380
    %v382 = vpop.f32.mrf.mxu0
    %v383 = vadd.f32 %v306, %v382
    %384 = vmatmul.bf16.gmra.mxu0 %v344
    %v385 = vpop.f32.mrf.mxu0
    %v386 = vadd.f32 %v306, %v385
    %v387 = vpop.f32.mrf.mxu0
    %v388 = vadd.f32 %v306, %v387
    %389 = vmatmul.bf16.gmra.mxu0 %v345
    %v390 = vpop.f32.mrf.mxu0
    %v391 = vadd.f32 %v306, %v390
    %v392 = vpop.f32.mrf.mxu0
    %v393 = vadd.f32 %v306, %v392
    %394 = vmatmul.bf16.gmra.mxu0 %v346
    %v395 = vpop.f32.mrf.mxu0
    %v396 = vadd.f32 %v306, %v395
    %v397 = vpop.f32.mrf.mxu0
    %v398 = vadd.f32 %v306, %v397
    %399 = vmatmul.bf16.gmra.mxu0 %v347
    %v400 = vpop.f32.mrf.mxu0
    %v401 = vadd.f32 %v306, %v400
    %v402 = vpop.f32.mrf.mxu0
    %v403 = vadd.f32 %v306, %v402
    %404 = vdwg.mxu0
    %v405 = vmax.f32 %v366, 0.0
    %v406 = vmax.f32 %v368, 0.0
    %v407 = vmax.f32 %v371, 0.0
    %v408 = vmax.f32 %v373, 0.0
    %v409 = vmax.f32 %v376, 0.0
    %v410 = vmax.f32 %v378, 0.0
    %v411 = vmax.f32 %v381, 0.0
    %v412 = vmax.f32 %v383, 0.0
    %v413 = vmax.f32 %v386, 0.0
    %v414 = vmax.f32 %v388, 0.0
    %v415 = vmax.f32 %v391, 0.0
    %v416 = vmax.f32 %v393, 0.0
    %v417 = vmax.f32 %v396, 0.0
    %v418 = vmax.f32 %v398, 0.0
    %v419 = vmax.f32 %v401, 0.0
    %v420 = vmax.f32 %v403, 0.0
    %v421 = vpack.c.bf16 %v406, %v405
    %v422 = vpack.c.bf16 %v408, %v407
    %v423 = vpack.c.bf16 %v410, %v409
    %v424 = vpack.c.bf16 %v412, %v411
    %v425 = vpack.c.bf16 %v414, %v413
    %v426 = vpack.c.bf16 %v416, %v415
    %v427 = vpack.c.bf16 %v418, %v417
    %v428 = vpack.c.bf16 %v420, %v419
    %v429 = vld [vmem:[#allocation8] sm:$0xf]
    %v430 = vld [vmem:[#allocation8 + $0x4] sm:$0xf]
    %v431 = vld [vmem:[#allocation8 + $0x8] sm:$0xf]
    %v432 = vld [vmem:[#allocation8 + $0xc] sm:$0xf]
    %v433 = vld [vmem:[#allocation8 + $0x10] sm:$0xf]
    %v434 = vld [vmem:[#allocation8 + $0x14] sm:$0xf]
    %v435 = vld [vmem:[#allocation8 + $0x18] sm:$0xf]
    %v436 = vld [vmem:[#allocation8 + $0x1c] sm:$0xf]
    %v437 = vld [vmem:[#allocation8 + $0x20] sm:$0xf]
    %v438 = vld [vmem:[#allocation8 + $0x24] sm:$0xf]
    %v439 = vld [vmem:[#allocation8 + $0x28] sm:$0xf]
    %v440 = vld [vmem:[#allocation8 + $0x2c] sm:$0xf]
    %v441 = vld [vmem:[#allocation8 + $0x30] sm:$0xf]
    %v442 = vld [vmem:[#allocation8 + $0x34] sm:$0xf]
    %v443 = vld [vmem:[#allocation8 + $0x38] sm:$0xf]
    %v444 = vld [vmem:[#allocation8 + $0x3c] sm:$0xf]
    %v461 = vunpack.c.l.b16 %v429
    %v462 = vunpack.c.l.b16 %v430
    %v463 = vunpack.c.l.b16 %v431
    %v464 = vunpack.c.l.b16 %v432
    %v465 = vunpack.c.l.b16 %v433
    %v466 = vunpack.c.l.b16 %v434
    %v467 = vunpack.c.l.b16 %v435
    %v468 = vunpack.c.l.b16 %v436
    %v469 = vunpack.c.l.b16 %v437
    %v470 = vunpack.c.l.b16 %v438
    %v471 = vunpack.c.l.b16 %v439
    %v472 = vunpack.c.l.b16 %v440
    %v473 = vunpack.c.l.b16 %v441
    %v474 = vunpack.c.l.b16 %v442
    %v475 = vunpack.c.l.b16 %v443
    %v476 = vunpack.c.l.b16 %v444
    %v477 = vpack.c.b16 %v462, %v461
    %v478 = vpack.c.b16 %v464, %v463
    %v479 = vpack.c.b16 %v466, %v465
    %v480 = vpack.c.b16 %v468, %v467
    %v481 = vpack.c.b16 %v470, %v469
    %v482 = vpack.c.b16 %v472, %v471
    %v483 = vpack.c.b16 %v474, %v473
    %v484 = vpack.c.b16 %v476, %v475
    %493 = vmatpush.bf16.msra.mxu0 %v484
    %494 = vmatpush.bf16.msra.mxu0 %v483
    %495 = vmatpush.bf16.msra.mxu0 %v482
    %496 = vmatpush.bf16.msra.mxu0 %v481
    %497 = vmatpush.bf16.msra.mxu0 %v480
    %498 = vmatpush.bf16.msra.mxu0 %v479
    %499 = vmatpush.bf16.msra.mxu0 %v478
    %500 = vmatpush.bf16.msra.mxu0 %v477
    %501 = vmatmul.bf16.gmra.mxu0 %v421
    %v502 = vpop.f32.mrf.mxu0
    %v503 = vadd.f32 0.0, %v502
    %v504 = vpop.f32.mrf.mxu0
    %v505 = vadd.f32 0.0, %v504
    %506 = vmatmul.bf16.gmra.mxu0 %v422
    %v507 = vpop.f32.mrf.mxu0
    %v508 = vadd.f32 0.0, %v507
    %v509 = vpop.f32.mrf.mxu0
    %v510 = vadd.f32 0.0, %v509
    %511 = vmatmul.bf16.gmra.mxu0 %v423
    %v512 = vpop.f32.mrf.mxu0
    %v513 = vadd.f32 0.0, %v512
    %v514 = vpop.f32.mrf.mxu0
    %v515 = vadd.f32 0.0, %v514
    %516 = vmatmul.bf16.gmra.mxu0 %v424
    %v517 = vpop.f32.mrf.mxu0
    %v518 = vadd.f32 0.0, %v517
    %v519 = vpop.f32.mrf.mxu0
    %v520 = vadd.f32 0.0, %v519
    %521 = vmatmul.bf16.gmra.mxu0 %v425
    %v522 = vpop.f32.mrf.mxu0
    %v523 = vadd.f32 0.0, %v522
    %v524 = vpop.f32.mrf.mxu0
    %v525 = vadd.f32 0.0, %v524
    %526 = vmatmul.bf16.gmra.mxu0 %v426
    %v527 = vpop.f32.mrf.mxu0
    %v528 = vadd.f32 0.0, %v527
    %v529 = vpop.f32.mrf.mxu0
    %v530 = vadd.f32 0.0, %v529
    %531 = vmatmul.bf16.gmra.mxu0 %v427
    %v532 = vpop.f32.mrf.mxu0
    %v533 = vadd.f32 0.0, %v532
    %v534 = vpop.f32.mrf.mxu0
    %v535 = vadd.f32 0.0, %v534
    %536 = vmatmul.bf16.gmra.mxu0 %v428
    %v537 = vpop.f32.mrf.mxu0
    %v538 = vadd.f32 0.0, %v537
    %v539 = vpop.f32.mrf.mxu0
    %v540 = vadd.f32 0.0, %v539
    %541 = vdwg.mxu0
    %v542 = vpack.c.bf16 %v505, %v503
    %v543 = vpack.c.bf16 %v510, %v508
    %v544 = vpack.c.bf16 %v515, %v513
    %v545 = vpack.c.bf16 %v520, %v518
    %v546 = vpack.c.bf16 %v525, %v523
    %v547 = vpack.c.bf16 %v530, %v528
    %v548 = vpack.c.bf16 %v535, %v533
    %v549 = vpack.c.bf16 %v540, %v538
    %v550 = vld [vmem:[%s5] sm:$0x1]
    %v552 = vperm.slane %v550, 0
    %554 = vmatpush.bf16.msra.mxu0 %v549
    %555 = vmatpush.bf16.msra.mxu0 %v548
    %556 = vmatpush.bf16.msra.mxu0 %v547
    %557 = vmatpush.bf16.msra.mxu0 %v546
    %558 = vmatpush.bf16.msra.mxu0 %v545
    %559 = vmatpush.bf16.msra.mxu0 %v544
    %560 = vmatpush.bf16.msra.mxu0 %v543
    %561 = vmatpush.bf16.msra.mxu0 %v542
    %562 = vmatmul.bf16.gmra.mxu0 %v340
    %v563 = vpop.f32.mrf.mxu0
    %v564 = vadd.f32 %v552, %v563
    %v565 = vpop.f32.mrf.mxu0
    %v566 = vadd.f32 %v552, %v565
    %567 = vmatmul.bf16.gmra.mxu0 %v341
    %v568 = vpop.f32.mrf.mxu0
    %v569 = vadd.f32 %v552, %v568
    %v570 = vpop.f32.mrf.mxu0
    %v571 = vadd.f32 %v552, %v570
    %572 = vmatmul.bf16.gmra.mxu0 %v342
    %v573 = vpop.f32.mrf.mxu0
    %v574 = vadd.f32 %v552, %v573
    %v575 = vpop.f32.mrf.mxu0
    %v576 = vadd.f32 %v552, %v575
    %577 = vmatmul.bf16.gmra.mxu0 %v343
    %v578 = vpop.f32.mrf.mxu0
    %v579 = vadd.f32 %v552, %v578
    %v580 = vpop.f32.mrf.mxu0
    %v581 = vadd.f32 %v552, %v580
    %582 = vmatmul.bf16.gmra.mxu0 %v344
    %v583 = vpop.f32.mrf.mxu0
    %v584 = vadd.f32 %v552, %v583
    %v585 = vpop.f32.mrf.mxu0
    %v586 = vadd.f32 %v552, %v585
    %587 = vmatmul.bf16.gmra.mxu0 %v345
    %v588 = vpop.f32.mrf.mxu0
    %v589 = vadd.f32 %v552, %v588
    %v590 = vpop.f32.mrf.mxu0
    %v591 = vadd.f32 %v552, %v590
    %592 = vmatmul.bf16.gmra.mxu0 %v346
    %v593 = vpop.f32.mrf.mxu0
    %v594 = vadd.f32 %v552, %v593
    %v595 = vpop.f32.mrf.mxu0
    %v596 = vadd.f32 %v552, %v595
    %597 = vmatmul.bf16.gmra.mxu0 %v347
    %v598 = vpop.f32.mrf.mxu0
    %v599 = vadd.f32 %v552, %v598
    %v600 = vpop.f32.mrf.mxu0
    %v601 = vadd.f32 %v552, %v600
    %602 = vdwg.mxu0
    %v603 = vld [vmem:[#allocation10] sm:$0xff]
    %604 = vmatpush.msra.mxu0 %v601
    %605 = vmatpush.msra.mxu0 %v599
    %606 = vmatpush.msra.mxu0 %v596
    %607 = vmatpush.msra.mxu0 %v594
    %608 = vmatpush.msra.mxu0 %v591
    %609 = vmatpush.msra.mxu0 %v589
    %610 = vmatpush.msra.mxu0 %v586
    %611 = vmatpush.msra.mxu0 %v584
    %612 = vmatpush.msra.mxu0 %v581
    %613 = vmatpush.msra.mxu0 %v579
    %614 = vmatpush.msra.mxu0 %v576
    %615 = vmatpush.msra.mxu0 %v574
    %616 = vmatpush.msra.mxu0 %v571
    %617 = vmatpush.msra.mxu0 %v569
    %618 = vmatpush.msra.mxu0 %v566
    %619 = vmatpush.msra.mxu0 %v564
    %620 = vmatmul.f32.gmra.mxu0 %v603
    %v621 = vpop.f32.mrf.mxu0
    %v622 = vadd.f32 0.0, %v621
    %623 = vdwg.mxu0
    %v624 = vlaneseq
    %v625 = vand.u32 %v624, 127
    %vm626 = vcmp.lt.s32.totalorder %v625, 4
    %v627 = vsel %vm626, %v622, -1e+30
    %628 = vmax.xlane.f32.xlu0 %v627
    %v629 = vpop.xlane.xlu0 %628
    %v630 = vsub.f32 %v627, %v629
    %v631 = vmul.f32 %v630, 1.442695
    %v632 = vpow.pop %v631
    %v633 = vsel %vm626, %v632, 0.0
    %634 = vadd.xlane.f32.xlu0 %v633
    %v635 = vpop.xlane.xlu0 %634
    %v636 = vlog2.pop %v635
    %v637 = vmul.f32 %v636, 0.6931472
    %v638 = vsub.f32 %v630, %v637
    %639 = vst [vmem:[#allocation11] sm:$0xff] %v638
    // Predicated region
    $region50: #{tpu_custom_call.1} parent=1 // pred_check
      _
    $region51: #{tpu_custom_call.1} parent=1 // pred_check_branch
      %641 = sbr.rel (0) target = $region53
    $region52: #{tpu_custom_call.1} parent=1 // pred_region
      %643 = vsyncadd [#allocation4], 0
      %s645 = sshll.u32 [#allocation11], 4
      %s646 = int_to_ptr.vmem [resolvable:$true] %s645
      %s647 = sshll.u32 %s7, 4
      %s648 = int_to_ptr.hbm [resolvable:$true] %s647
      %650 = dma.vmem_to_hbm [thread:$0]  %s646, 128, %s648, [#allocation4]
    $region53: #{tpu_custom_call.1} parent=1 // pred_fallthru
      _
    // Predicated region
    $region54: #{tpu_custom_call.1} parent=1 // pred_check
      _
    $region55: #{tpu_custom_call.1} parent=1 // pred_check_branch
      %652 = sbr.rel (0) target = $region57
    $region56: #{tpu_custom_call.1} parent=1 // pred_region
      %654 = dma.done [#allocation4], 128
    $region57: #{tpu_custom_call.1} parent=1 // pred_fallthru
      _
    %655 = vsyncpa [#allocation3], 1
    %656 = vsyncpa [#allocation6], 1
    %657 = vsyncpa [#allocation9], 1
    %658 = vsyncpa [#allocation4], 1

</llo_original>
